<compile_context>
chip_gen: v5e
topology: v5e:2x2
jax: 0.10.0
libtpu: 0.0.40
codegen_flags: <defaults>
</compile_context>

<pallas_src>
import functools

import jax
import jax.numpy as jnp
from jax import lax
from jax.experimental import pallas as pl
from jax.experimental.pallas import tpu as pltpu


# ---------------------------------------------------------------------------
# Kernel 1: fused QKV projection (the three 1x1 convolutions).
# ---------------------------------------------------------------------------
def _qkv_projection_kernel(x_ref, wq_ref, bq_ref, wk_ref, bk_ref, wvt_ref,
                           bvt_ref, q_ref, k_ref, vt_ref):
    xb = x_ref[...].astype(jnp.bfloat16)                                  # (C, tn)

    # q / k in (Cq, tn) lane-dense layout (1/sqrt(Cq) already folded into wq/bq).
    q = jnp.dot(wq_ref[...], xb, preferred_element_type=jnp.float32)
    q_ref[...] = (q + bq_ref[...]).astype(jnp.bfloat16)                  # (Cq, tn)

    k = jnp.dot(wk_ref[...], xb, preferred_element_type=jnp.float32)
    k_ref[...] = (k + bk_ref[...]).astype(jnp.bfloat16)                  # (Cq, tn)

    # v produced directly transposed:  v^T = x^T @ wv^T  -> (tn, C).
    # Contracting dim 0 of both operands is the MXU-native lhs-transposed form,
    # so no large transpose is ever materialized for v.
    vt = lax.dot_general(xb, wvt_ref[...],
                         dimension_numbers=(((0,), (0,)), ((), ())),
                         preferred_element_type=jnp.float32)
    vt_ref[...] = (vt + bvt_ref[...]).astype(jnp.bfloat16)               # (tn, C)


# ---------------------------------------------------------------------------
# Kernel 2: spatial softmax attention.
# ---------------------------------------------------------------------------
def _attention_kernel(q_ref, k_ref, vt_ref, o_ref, *, n_valid, num_sub):
    np_total = k_ref.shape[-1]        # padded sequence length
    tq = q_ref.shape[-1]              # query tile width
    th = tq // num_sub
    halves = []
    # Static unroll over half-tiles: the softmax (VPU/EUP/XLU) of one half can be
    # scheduled under the MXU matmuls of the other half (single basic block).
    for h in range(num_sub):
        q_t = q_ref[:, h * th:(h + 1) * th]                              # (Cq, th) bf16
        # scores: (q_t)^T @ k -> (th, Np); lhs-transposed MXU-native matmul.
        s = lax.dot_general(q_t, k_ref[...],
                            dimension_numbers=(((0,), (0,)), ((), ())),
                            preferred_element_type=jnp.float32)
        if n_valid < np_total:        # mask zero-padded key columns (static branch)
            col = lax.broadcasted_iota(jnp.int32, s.shape, 1)
            s = jnp.where(col < n_valid, s, -1e30)
        s = s - jnp.max(s, axis=-1, keepdims=True)
        p = jnp.exp(s)
        p = p * pl.reciprocal(jnp.sum(p, axis=-1, keepdims=True), approx=True)
        # output half: p @ v^T -> (th, C), natural (M,K)x(K,N) matmul, no p transpose.
        halves.append(jnp.dot(p.astype(jnp.bfloat16), vt_ref[...],
                              preferred_element_type=jnp.float32))
    out_t = halves[0] if num_sub == 1 else jnp.concatenate(halves, axis=0)  # (tq, C)
    # Only the small (tq, C) result is transposed (N/C cheaper than transposing p),
    # and the store stays lane-dense in tq.
    o_ref[...] = out_t.T.astype(o_ref.dtype)                             # (C, tq)


# ---------------------------------------------------------------------------
# Wrapper helpers.
# ---------------------------------------------------------------------------
def _vmem_capacity_bytes():
    try:
        return int(pltpu.get_tpu_info().vmem_capacity_bytes)
    except Exception:
        return 64 << 20        # conservative fallback (v7x-sized)


def _vmem_limit(est_bytes):
    cap = _vmem_capacity_bytes()
    hi = int(cap * 0.85)       # leave headroom; never clamp at an artificial 64 MiB
    return max(16 << 20, min(max(int(est_bytes), 24 << 20), hi))


def _pick_query_tile(np_total):
    """tq=256 only where it pays (v6e's 256-wide MXU output); 128 on v5e/v7x/unknown."""
    kind = ""
    try:
        kind = jax.devices()[0].device_kind.lower()
    except Exception:
        pass
    if "v6" in kind and np_total % 256 == 0:
        return 256
    return 128


def self_attention(x_nchw, wq, bq, wk, bk, wv, bv):
    """x_nchw: (B, C, W, H).  wq/wk: (C//8, C); wv: (C, C); biases 1-D."""
    B, C, W, H = x_nchw.shape
    N = W * H
    Cq = wq.shape[0]
    scale = 1.0 / float(Cq) ** 0.5

    # Pad the spatial axis to a lane-dense multiple of 128; padded key columns are
    # masked inside the attention kernel before the softmax.
    Np = ((N + 127) // 128) * 128
    x = x_nchw.reshape(B, C, N)                    # NCHW -> (B, C, N): free reshape
    if Np != N:
        x = jnp.pad(x, ((0, 0), (0, 0), (0, Np - N)))

    tq = _pick_query_tile(Np)
    tn = next(t for t in (512, 256, 128) if Np % t == 0)

    # bf16 weights; fold 1/sqrt(Cq) into the query projection; wv pre-transposed so
    # the projection kernel can emit v^T without any in-kernel transpose of v.
    wq_b = (wq * scale).astype(jnp.bfloat16)                 # (Cq, C)
    wk_b = wk.astype(jnp.bfloat16)                           # (Cq, C)
    wvt_b = wv.T.astype(jnp.bfloat16)                        # (C_in, C_out)
    bq_c = (bq * scale).astype(jnp.float32).reshape(Cq, 1)
    bk_c = bk.astype(jnp.float32).reshape(Cq, 1)
    bvt_c = bv.astype(jnp.float32).reshape(1, C)

    x_isize = jnp.dtype(x.dtype).itemsize
    o_dtype = x_nchw.dtype
    o_isize = jnp.dtype(o_dtype).itemsize

    # ---- 1) QKV projection --------------------------------------------------
    proj_est = int(1.5 * (2 * C * tn * x_isize                       # x block (dbl-buf)
                          + 2 * (2 * Cq * C + C * C) * 2             # weights
                          + 2 * (2 * Cq + C) * 4                     # biases
                          + 2 * 2 * Cq * tn * 2 + 2 * tn * C * 2     # q/k/vT out blocks
                          + 2 * (2 * Cq + C) * tn * 4)) + (2 << 20)  # f32 matmul temps
    proj_cost = pl.CostEstimate(
        flops=2 * B * (2 * Cq + C) * C * Np,
        transcendentals=0,
        bytes_accessed=B * (C * Np * x_isize + (2 * Cq + C) * Np * 2)
        + (2 * Cq * C + C * C) * 2,
    )
    q, k, vt = pl.pallas_call(
        _qkv_projection_kernel,
        out_shape=(
            jax.ShapeDtypeStruct((B, Cq, Np), jnp.bfloat16),
            jax.ShapeDtypeStruct((B, Cq, Np), jnp.bfloat16),
            jax.ShapeDtypeStruct((B, Np, C), jnp.bfloat16),
        ),
        grid_spec=pltpu.PrefetchScalarGridSpec(
            num_scalar_prefetch=0,
            grid=(B, Np // tn),
            in_specs=[
                pl.BlockSpec((None, C, tn), lambda b, n: (b, 0, n)),   # x tile
                pl.BlockSpec((Cq, C), lambda b, n: (0, 0)),            # wq (scaled)
                pl.BlockSpec((Cq, 1), lambda b, n: (0, 0)),            # bq (scaled)
                pl.BlockSpec((Cq, C), lambda b, n: (0, 0)),            # wk
                pl.BlockSpec((Cq, 1), lambda b, n: (0, 0)),            # bk
                pl.BlockSpec((C, C), lambda b, n: (0, 0)),             # wv^T
                pl.BlockSpec((1, C), lambda b, n: (0, 0)),             # bv (row)
            ],
            out_specs=[
                pl.BlockSpec((None, Cq, tn), lambda b, n: (b, 0, n)),  # q (Cq, N)
                pl.BlockSpec((None, Cq, tn), lambda b, n: (b, 0, n)),  # k (Cq, N)
                pl.BlockSpec((None, tn, C), lambda b, n: (b, n, 0)),   # v^T (N, C)
            ],
        ),
        compiler_params=pltpu.CompilerParams(
            dimension_semantics=("parallel", "parallel"),
            vmem_limit_bytes=_vmem_limit(proj_est),
        ),
        cost_estimate=proj_cost,
    )(x, wq_b, bq_c, wk_b, bk_c, wvt_b, bvt_c)

    # ---- 2) attention ---------------------------------------------------------
    th = tq // 2
    attn_est = int(1.5 * (2 * Cq * tq * 2                       # q tile (dbl-buf)
                          + 2 * Cq * Np * 2                     # k (dbl-buf)
                          + 2 * Np * C * 2                      # v^T (dbl-buf)
                          + 2 * C * tq * o_isize                # out block (dbl-buf)
                          + 4 * th * Np * 4                     # score/prob temps
                          + 3 * tq * C * 4)) + (2 << 20)        # out halves / transpose
    attn_cost = pl.CostEstimate(
        flops=2 * B * (Cq + C) * Np * Np,
        transcendentals=B * Np * Np,
        bytes_accessed=B * (2 * Cq * Np * 2 + Np * C * 2 + C * Np * o_isize),
    )
    out = pl.pallas_call(
        functools.partial(_attention_kernel, n_valid=N, num_sub=2),
        out_shape=jax.ShapeDtypeStruct((B, C, Np), o_dtype),
        grid_spec=pltpu.PrefetchScalarGridSpec(
            num_scalar_prefetch=0,
            grid=(B, Np // tq),
            in_specs=[
                pl.BlockSpec((None, Cq, tq), lambda b, i: (b, 0, i)),  # q tile
                pl.BlockSpec((None, Cq, Np), lambda b, i: (b, 0, 0)),  # full k (reused)
                pl.BlockSpec((None, Np, C), lambda b, i: (b, 0, 0)),   # full v^T (reused)
            ],
            out_specs=pl.BlockSpec((None, C, tq), lambda b, i: (b, 0, i)),
        ),
        compiler_params=pltpu.CompilerParams(
            dimension_semantics=("parallel", "parallel"),   # no cross-tile state -> megacore OK
            vmem_limit_bytes=_vmem_limit(attn_est),
        ),
        cost_estimate=attn_cost,
    )(q, k, vt)

    if Np != N:
        out = out[:, :, :N]
    return out.reshape(B, C, W, H)


# ---------------------------------------------------------------------------
# Pure-JAX (f32) reference matching the PyTorch forward.
# ---------------------------------------------------------------------------
def _reference(x_nchw, wq, bq, wk, bk, wv, bv):
    B, C, W, H = x_nchw.shape
    N = W * H
    xf = x_nchw.reshape(B, C, N).astype(jnp.float32)
    q = jnp.einsum('oc,bcn->bon', wq, xf) + bq[None, :, None]     # (B, C//8, N)
    k = jnp.einsum('oc,bcn->bon', wk, xf) + bk[None, :, None]
    v = jnp.einsum('oc,bcn->bon', wv, xf) + bv[None, :, None]     # (B, C, N)
    scores = jnp.einsum('bon,bom->bnm', q, k) / (wq.shape[0] ** 0.5)
    attn = jax.nn.softmax(scores, axis=-1)                        # (B, N, N)
    out = jnp.einsum('bcn,bmn->bcm', v, attn)                     # (B, C, N)
    return out.reshape(B, C, W, H)


if __name__ == "__main__":
    key = jax.random.PRNGKey(0)

    def _run_case(case_key, B, C, W, H):
        Cq = C // 8
        ks = jax.random.split(case_key, 7)
        x = jax.random.normal(ks[0], (B, C, W, H), dtype=jnp.float32)
        # Conv2d(C, C//8, 1) -> weight (C//8, C), bias (C//8,); Conv2d(C, C, 1) -> (C, C), (C,)
        wq = jax.random.normal(ks[1], (Cq, C), dtype=jnp.float32) * 0.1
        bq = jax.random.normal(ks[2], (Cq,), dtype=jnp.float32) * 0.1
        wk = jax.random.normal(ks[3], (Cq, C), dtype=jnp.float32) * 0.1
        bk = jax.random.normal(ks[4], (Cq,), dtype=jnp.float32) * 0.1
        wv = jax.random.normal(ks[5], (C, C), dtype=jnp.float32) * 0.1
        bv = jax.random.normal(ks[6], (C,), dtype=jnp.float32) * 0.1

        out = jax.block_until_ready(self_attention(x, wq, bq, wk, bk, wv, bv))
        ref = _reference(x, wq, bq, wk, bk, wv, bv)
        assert out.shape == (B, C, W, H)
        # bf16 matmul operands (f32 accumulation / f32 softmax) -> relaxed tolerance.
        assert jnp.allclose(out, ref, atol=3e-2, rtol=3e-2), \
            f"mismatch vs reference (B={B}, C={C}, W={W}, H={H})"

    k1, k2 = jax.random.split(key)
    _run_case(k1, B=2, C=32, W=8, H=8)     # N=64 -> padded to 128 (masked-key path)
    _run_case(k2, B=1, C=32, W=16, H=16)   # N=256, multi-query-tile lane-dense path

    print("KERNEL_OK")
</pallas_src>

<mosaic_0001>
module attributes {stable_mosaic.version = 11 : i64} {
  func.func @_qkv_projection_kernel(%arg0: i32, %arg1: i32, %arg2: memref<1x32x128xf32, #tpu.memory_space<vmem>>, %arg3: memref<4x32xbf16, #tpu.memory_space<vmem>>, %arg4: memref<4x1xf32, #tpu.memory_space<vmem>>, %arg5: memref<4x32xbf16, #tpu.memory_space<vmem>>, %arg6: memref<4x1xf32, #tpu.memory_space<vmem>>, %arg7: memref<32x32xbf16, #tpu.memory_space<vmem>>, %arg8: memref<1x32xf32, #tpu.memory_space<vmem>>, %arg9: memref<1x4x128xbf16, #tpu.memory_space<vmem>>, %arg10: memref<1x4x128xbf16, #tpu.memory_space<vmem>>, %arg11: memref<1x128x32xbf16, #tpu.memory_space<vmem>>) attributes {dimension_semantics = [#tpu.dimension_semantics<parallel>, #tpu.dimension_semantics<parallel>], iteration_bounds = array<i64: 2, 1>, scalar_prefetch = 0 : i64, scratch_operands = 0 : i64, tpu.core_type = #tpu.core_type<tc>, window_params = [{transform_indices = @transform_0, window_bounds = array<i64: 1, 32, 128>}, {pipeline_mode = #tpu.pipeline_mode<synchronous>, transform_indices = @transform_1, window_bounds = array<i64: 4, 32>}, {pipeline_mode = #tpu.pipeline_mode<synchronous>, transform_indices = @transform_2, window_bounds = array<i64: 4, 1>}, {pipeline_mode = #tpu.pipeline_mode<synchronous>, transform_indices = @transform_3, window_bounds = array<i64: 4, 32>}, {pipeline_mode = #tpu.pipeline_mode<synchronous>, transform_indices = @transform_4, window_bounds = array<i64: 4, 1>}, {pipeline_mode = #tpu.pipeline_mode<synchronous>, transform_indices = @transform_5, window_bounds = array<i64: 32, 32>}, {pipeline_mode = #tpu.pipeline_mode<synchronous>, transform_indices = @transform_6, window_bounds = array<i64: 1, 32>}, {transform_indices = @transform_7, window_bounds = array<i64: 1, 4, 128>}, {transform_indices = @transform_8, window_bounds = array<i64: 1, 4, 128>}, {transform_indices = @transform_9, window_bounds = array<i64: 1, 128, 32>}]} {
    %c0 = arith.constant 0 : index
    %c0_0 = arith.constant 0 : index
    %c0_1 = arith.constant 0 : index
    %0 = vector.load %arg2[%c0, %c0_0, %c0_1] : memref<1x32x128xf32, #tpu.memory_space<vmem>>, vector<1x32x128xf32>
    %1 = vector.shape_cast %0 : vector<1x32x128xf32> to vector<32x128xf32>
    %2 = arith.truncf %1 : vector<32x128xf32> to vector<32x128xbf16>
    %c0_2 = arith.constant 0 : index
    %c0_3 = arith.constant 0 : index
    %3 = vector.load %arg3[%c0_2, %c0_3] : memref<4x32xbf16, #tpu.memory_space<vmem>>, vector<4x32xbf16>
    %cst = arith.constant dense<0.000000e+00> : vector<4x128xf32>
    %4 = tpu.matmul %3, %2, %cst {dimension_numbers = #tpu.dot_dimension_numbers<[1], [0], [0], [1], [0, 0, 1, 1], [], []>} : vector<4x32xbf16>, vector<32x128xbf16>, vector<4x128xf32> -> vector<4x128xf32>
    %c0_4 = arith.constant 0 : index
    %c0_5 = arith.constant 0 : index
    %5 = vector.load %arg4[%c0_4, %c0_5] : memref<4x1xf32, #tpu.memory_space<vmem>>, vector<4x1xf32>
    %6 = vector.broadcast %5 : vector<4x1xf32> to vector<4x128xf32>
    %7 = arith.addf %4, %6 : vector<4x128xf32>
    %8 = arith.truncf %7 : vector<4x128xf32> to vector<4x128xbf16>
    %c0_6 = arith.constant 0 : index
    %c0_7 = arith.constant 0 : index
    %c0_8 = arith.constant 0 : index
    %9 = vector.load %arg9[%c0_6, %c0_7, %c0_8] : memref<1x4x128xbf16, #tpu.memory_space<vmem>>, vector<1x4x128xbf16>
    %10 = vector.shape_cast %9 : vector<1x4x128xbf16> to vector<4x128xbf16>
    %11 = vector.shape_cast %8 : vector<4x128xbf16> to vector<1x4x128xbf16>
    tpu.vector_store %arg9[%c0_6, %c0_7, %c0_8], %11 {strides = array<i32>} : memref<1x4x128xbf16, #tpu.memory_space<vmem>>, vector<1x4x128xbf16>,
    %c0_9 = arith.constant 0 : index
    %c0_10 = arith.constant 0 : index
    %12 = vector.load %arg5[%c0_9, %c0_10] : memref<4x32xbf16, #tpu.memory_space<vmem>>, vector<4x32xbf16>
    %cst_11 = arith.constant dense<0.000000e+00> : vector<4x128xf32>
    %13 = tpu.matmul %12, %2, %cst_11 {dimension_numbers = #tpu.dot_dimension_numbers<[1], [0], [0], [1], [0, 0, 1, 1], [], []>} : vector<4x32xbf16>, vector<32x128xbf16>, vector<4x128xf32> -> vector<4x128xf32>
    %c0_12 = arith.constant 0 : index
    %c0_13 = arith.constant 0 : index
    %14 = vector.load %arg6[%c0_12, %c0_13] : memref<4x1xf32, #tpu.memory_space<vmem>>, vector<4x1xf32>
    %15 = vector.broadcast %14 : vector<4x1xf32> to vector<4x128xf32>
    %16 = arith.addf %13, %15 : vector<4x128xf32>
    %17 = arith.truncf %16 : vector<4x128xf32> to vector<4x128xbf16>
    %c0_14 = arith.constant 0 : index
    %c0_15 = arith.constant 0 : index
    %c0_16 = arith.constant 0 : index
    %18 = vector.load %arg10[%c0_14, %c0_15, %c0_16] : memref<1x4x128xbf16, #tpu.memory_space<vmem>>, vector<1x4x128xbf16>
    %19 = vector.shape_cast %18 : vector<1x4x128xbf16> to vector<4x128xbf16>
    %20 = vector.shape_cast %17 : vector<4x128xbf16> to vector<1x4x128xbf16>
    tpu.vector_store %arg10[%c0_14, %c0_15, %c0_16], %20 {strides = array<i32>} : memref<1x4x128xbf16, #tpu.memory_space<vmem>>, vector<1x4x128xbf16>,
    %c0_17 = arith.constant 0 : index
    %c0_18 = arith.constant 0 : index
    %21 = vector.load %arg7[%c0_17, %c0_18] : memref<32x32xbf16, #tpu.memory_space<vmem>>, vector<32x32xbf16>
    %cst_19 = arith.constant dense<0.000000e+00> : vector<128x32xf32>
    %22 = tpu.matmul %2, %21, %cst_19 {dimension_numbers = #tpu.dot_dimension_numbers<[0], [0], [1], [1], [0, 1, 1, 1], [], []>} : vector<32x128xbf16>, vector<32x32xbf16>, vector<128x32xf32> -> vector<128x32xf32>
    %c0_20 = arith.constant 0 : index
    %c0_21 = arith.constant 0 : index
    %23 = vector.load %arg8[%c0_20, %c0_21] : memref<1x32xf32, #tpu.memory_space<vmem>>, vector<1x32xf32>
    %24 = vector.broadcast %23 : vector<1x32xf32> to vector<128x32xf32>
    %25 = arith.addf %22, %24 : vector<128x32xf32>
    %26 = arith.truncf %25 : vector<128x32xf32> to vector<128x32xbf16>
    %c0_22 = arith.constant 0 : index
    %c0_23 = arith.constant 0 : index
    %c0_24 = arith.constant 0 : index
    %27 = vector.load %arg11[%c0_22, %c0_23, %c0_24] : memref<1x128x32xbf16, #tpu.memory_space<vmem>>, vector<1x128x32xbf16>
    %28 = vector.shape_cast %27 : vector<1x128x32xbf16> to vector<128x32xbf16>
    %29 = vector.shape_cast %26 : vector<128x32xbf16> to vector<1x128x32xbf16>
    tpu.vector_store %arg11[%c0_22, %c0_23, %c0_24], %29 {strides = array<i32>} : memref<1x128x32xbf16, #tpu.memory_space<vmem>>, vector<1x128x32xbf16>,
    return
  }
  func.func @transform_0(%arg0: i32, %arg1: i32) -> (i32, i32, i32) {
    %c0_i32 = arith.constant 0 : i32
    %c0_i32_0 = arith.constant 0 : i32
    return %arg0, %c0_i32, %arg1 : i32, i32, i32
  }
  func.func @transform_1(%arg0: i32, %arg1: i32) -> (i32, i32) {
    %c0_i32 = arith.constant 0 : i32
    %c0_i32_0 = arith.constant 0 : i32
    %c0_i32_1 = arith.constant 0 : i32
    return %c0_i32, %c0_i32_0 : i32, i32
  }
  func.func @transform_2(%arg0: i32, %arg1: i32) -> (i32, i32) {
    %c0_i32 = arith.constant 0 : i32
    %c0_i32_0 = arith.constant 0 : i32
    %c0_i32_1 = arith.constant 0 : i32
    return %c0_i32, %c0_i32_0 : i32, i32
  }
  func.func @transform_3(%arg0: i32, %arg1: i32) -> (i32, i32) {
    %c0_i32 = arith.constant 0 : i32
    %c0_i32_0 = arith.constant 0 : i32
    %c0_i32_1 = arith.constant 0 : i32
    return %c0_i32, %c0_i32_0 : i32, i32
  }
  func.func @transform_4(%arg0: i32, %arg1: i32) -> (i32, i32) {
    %c0_i32 = arith.constant 0 : i32
    %c0_i32_0 = arith.constant 0 : i32
    %c0_i32_1 = arith.constant 0 : i32
    return %c0_i32, %c0_i32_0 : i32, i32
  }
  func.func @transform_5(%arg0: i32, %arg1: i32) -> (i32, i32) {
    %c0_i32 = arith.constant 0 : i32
    %c0_i32_0 = arith.constant 0 : i32
    %c0_i32_1 = arith.constant 0 : i32
    return %c0_i32, %c0_i32_0 : i32, i32
  }
  func.func @transform_6(%arg0: i32, %arg1: i32) -> (i32, i32) {
    %c0_i32 = arith.constant 0 : i32
    %c0_i32_0 = arith.constant 0 : i32
    %c0_i32_1 = arith.constant 0 : i32
    return %c0_i32, %c0_i32_0 : i32, i32
  }
  func.func @transform_7(%arg0: i32, %arg1: i32) -> (i32, i32, i32) {
    %c0_i32 = arith.constant 0 : i32
    %c0_i32_0 = arith.constant 0 : i32
    return %arg0, %c0_i32, %arg1 : i32, i32, i32
  }
  func.func @transform_8(%arg0: i32, %arg1: i32) -> (i32, i32, i32) {
    %c0_i32 = arith.constant 0 : i32
    %c0_i32_0 = arith.constant 0 : i32
    return %arg0, %c0_i32, %arg1 : i32, i32, i32
  }
  func.func @transform_9(%arg0: i32, %arg1: i32) -> (i32, i32, i32) {
    %c0_i32 = arith.constant 0 : i32
    %c0_i32_0 = arith.constant 0 : i32
    return %arg0, %arg1, %c0_i32 : i32, i32, i32
  }
}

</mosaic_0001>

<llo_original>
// kernel: tpu_custom_call.1
$region0: #{tpu_custom_call.1}
  #allocation0 [shape = 'u32[]', space=smem, size = 0x4, offset = 0x4, fixed_abs, tag = 'smem constant byte address 0x4 - core index']
  #allocation1 [shape = 'u32[72,128]{1,0:T(1,128)}', space=vmem, size = 0x9000, scoped, tag = 'internal scratch']
  %s0 = inlined_call_operand.hbm [shape: f32[2,32,128], index: 0, kind: input, shape index: {}]
  %s1 = inlined_call_operand.vmem [shape: bf16[4,32], index: 1, kind: input, shape index: {}]
  %s2 = inlined_call_operand.vmem [shape: f32[4,1], index: 2, kind: input, shape index: {}]
  %s3 = inlined_call_operand.vmem [shape: bf16[4,32], index: 3, kind: input, shape index: {}]
  %s4 = inlined_call_operand.vmem [shape: f32[4,1], index: 4, kind: input, shape index: {}]
  %s5 = inlined_call_operand.hbm [shape: bf16[32,32], index: 5, kind: input, shape index: {}]
  %s6 = inlined_call_operand.vmem [shape: f32[1,32], index: 6, kind: input, shape index: {}]
  %s7 = inlined_call_operand.hbm [shape: bf16[2,4,128], index: 7, kind: output, shape index: {0}]
  %s8 = inlined_call_operand.hbm [shape: bf16[2,4,128], index: 8, kind: output, shape index: {1}]
  %s9 = inlined_call_operand.vmem [shape: bf16[2,128,32], index: 9, kind: output, shape index: {2}]
  %10 = xla_tuple %s7, %s8, %s9
  %s11 = sld [smem:[#allocation0]]
  $region85: #{tpu_custom_call.1} parent=0
    _
  %s13 = ssub.s32 1, %s11
  %s14 = scalar_select 0, %s13, %s11
  $region1: #{tpu_custom_call.1} parent=0
    #allocation2 [shape = 'u8[32768]{0}', space=vmem, size = 0x8000, scoped, tag = 'input window, operand 0']
    #allocation3 [shape = 's32[2]{0}', space=sflag, size = 0x8, scoped, tag = 'scoped memory for tpu_custom_call.1']
    #allocation4 [shape = 's32[2]{0}', space=sflag, size = 0x8, scoped, tag = 'scoped memory for tpu_custom_call.1']
    #allocation5 [shape = 'u8[8192]{0}', space=vmem, size = 0x2000, scoped, tag = 'input window, operand 5, single buffered']
    #allocation6 [shape = 's32[1]{0}', space=sflag, size = 0x4, scoped, tag = 'scoped memory for tpu_custom_call.1']
    #allocation7 [shape = 'u8[2048]{0}', space=vmem, size = 0x800, scoped, tag = 'output window, operand 0']
    #allocation8 [shape = 'u8[2048]{0}', space=vmem, size = 0x800, scoped, tag = 'output window, operand 1']
    #allocation9 [shape = 's32[2]{0}', space=sflag, size = 0x8, scoped, tag = 'scoped memory for tpu_custom_call.1']
    %15 = vsyncpa [#allocation3], 0
    %s16 = scalar_lea.sflag [#allocation3], 1
    %17 = vsyncpa %s16, 0
    %18 = vsyncpa [#allocation6], 0
    %19 = vsyncpa [#allocation4], 0
    %s20 = scalar_lea.sflag [#allocation4], 1
    %21 = vsyncpa %s20, 0
    %22 = vsyncpa [#allocation9], 0
    %s23 = scalar_lea.sflag [#allocation9], 1
    %24 = vsyncpa %s23, 0
    loop: start=0, step=1, limit=4
    $region2: #{tpu_custom_call.1} parent=1 // loop_pre_header
      _
    $region3: #{tpu_custom_call.1} parent=1 // loop_header
      %s26 = sphi 0, %s30
      %p27 = scmp.ge.s32.totalorder %s26, 4
      %s33 = sphi 0, %s45
      %s34 = sphi 0, %s41
      %s35 = sphi 0, %s33
      %s36 = sphi 0, %s34
      %s37 = sphi 0, %s35
      %s38 = sphi 0, %s36
      %s50 = sphi 0, %s52
      %s53 = sphi 0, %s50
      %s54 = sphi 0, %s53
      %s70 = sphi 0, %s54
      %s74 = sphi 0, %s74
      %s76 = sphi 0, %s74
      %s77 = sphi 0, %s76
      %s91 = sphi 0, %s77
      %s95 = sphi 0, %s95
      %s97 = sphi 0, %s95
      %s98 = sphi 0, %s97
      %s112 = sphi 0, %s98
      %s116 = sphi 0, %s116
      %s118 = sphi 0, %s116
      %s119 = sphi 0, %s118
      %s133 = sphi 0, %s119
      %s137 = sphi 0, %s137
      %s139 = sphi 0, %s137
      %s140 = sphi 0, %s139
      %s154 = sphi 0, %s140
      %s158 = sphi 0, %s158
      %s160 = sphi 0, %s158
      %s161 = sphi 0, %s160
      %s175 = sphi 0, %s161
      %s179 = sphi 0, %s179
      %s181 = sphi 0, %s179
      %s182 = sphi 0, %s181
      %s196 = sphi 0, %s182
      %s204 = sphi 0, %s206
      %s207 = sphi 0, %s204
      %s208 = sphi 0, %s207
      %s224 = sphi 0, %s208
      %s232 = sphi 0, %s234
      %s235 = sphi 0, %s232
      %s236 = sphi 0, %s235
      %s252 = sphi 0, %s236
      %s260 = sphi 0, %s262
      %s263 = sphi 0, %s260
      %s264 = sphi 0, %s263
      %s280 = sphi 0, %s264
    $region4: #{tpu_custom_call.1} parent=1 // loop_header_branch
      %29 = sbr.rel (%p27) target = $region8
    $region5: #{tpu_custom_call.1} parent=1 // loop_body
      %s31 = ssub.s32 %s26, 1
      %s32 = ssub.s32 %s26, 2
      %s39 = sadd.s32 1, %s34
      %p40 = scmp.ge.s32.totalorder %s39, 1
      %s41 = scalar_select %p40, 0, %s39
      %s42 = sadd.s32 1, %s33
      %s43 = scalar_select %p40, %s42, %s33
      %p44 = scmp.ge.s32.totalorder %s43, 2
      %s45 = scalar_select %p44, 0, %s43
      %s46 = ssub.s32 %s33, %s45
      %s47 = ssub.s32 %s34, %s41
      %s48 = sor.u32 %s46, %s47
      %p49 = scmp.eq.s32.totalorder %s48, 0
      %s51 = sadd.s32 %s50, 1
      %s52 = scalar_select %p49, %s50, %s51
      %p55 = pneg %p49
      %p56 = scmp.eq.s32.totalorder %s26, 1
      %p57 = por %p55, %p56
      %p58 = scmp.ne.s32.totalorder %s50, %s53
      %p59 = scmp.eq.s32.totalorder %s26, 0
      %p60 = por %p58, %p59
      %p61 = scmp.ne.s32.totalorder %s50, %s53
      %p62 = scmp.eq.s32.totalorder %s31, 1
      %p63 = por %p61, %p62
      %p64 = scmp.ne.s32.totalorder %s53, %s54
      %p65 = scmp.eq.s32.totalorder %s31, 0
      %p66 = por %p64, %p65
      %p67 = scmp.ne.s32.totalorder %s53, %s54
      %p68 = scmp.eq.s32.totalorder %s32, 1
      %p69 = por %p67, %p68
      %p71 = scmp.ne.s32.totalorder %s54, %s70
      %p72 = scmp.eq.s32.totalorder %s32, 0
      %p73 = por %p71, %p72
      %s75 = sadd.s32 %s74, 1
      %p78 = scmp.eq.s32.totalorder %s26, 1
      %p79 = scmp.ne.s32.totalorder %s74, %s76
      %p80 = scmp.eq.s32.totalorder %s26, 0
      %p81 = por %p79, %p80
      %p82 = scmp.ne.s32.totalorder %s74, %s76
      %p83 = scmp.eq.s32.totalorder %s31, 1
      %p84 = por %p82, %p83
      %p85 = scmp.ne.s32.totalorder %s76, %s77
      %p86 = scmp.eq.s32.totalorder %s31, 0
      %p87 = por %p85, %p86
      %p88 = scmp.ne.s32.totalorder %s76, %s77
      %p89 = scmp.eq.s32.totalorder %s32, 1
      %p90 = por %p88, %p89
      %p92 = scmp.ne.s32.totalorder %s77, %s91
      %p93 = scmp.eq.s32.totalorder %s32, 0
      %p94 = por %p92, %p93
      %s96 = sadd.s32 %s95, 1
      %p99 = scmp.eq.s32.totalorder %s26, 1
      %p100 = scmp.ne.s32.totalorder %s95, %s97
      %p101 = scmp.eq.s32.totalorder %s26, 0
      %p102 = por %p100, %p101
      %p103 = scmp.ne.s32.totalorder %s95, %s97
      %p104 = scmp.eq.s32.totalorder %s31, 1
      %p105 = por %p103, %p104
      %p106 = scmp.ne.s32.totalorder %s97, %s98
      %p107 = scmp.eq.s32.totalorder %s31, 0
      %p108 = por %p106, %p107
      %p109 = scmp.ne.s32.totalorder %s97, %s98
      %p110 = scmp.eq.s32.totalorder %s32, 1
      %p111 = por %p109, %p110
      %p113 = scmp.ne.s32.totalorder %s98, %s112
      %p114 = scmp.eq.s32.totalorder %s32, 0
      %p115 = por %p113, %p114
      %s117 = sadd.s32 %s116, 1
      %p120 = scmp.eq.s32.totalorder %s26, 1
      %p121 = scmp.ne.s32.totalorder %s116, %s118
      %p122 = scmp.eq.s32.totalorder %s26, 0
      %p123 = por %p121, %p122
      %p124 = scmp.ne.s32.totalorder %s116, %s118
      %p125 = scmp.eq.s32.totalorder %s31, 1
      %p126 = por %p124, %p125
      %p127 = scmp.ne.s32.totalorder %s118, %s119
      %p128 = scmp.eq.s32.totalorder %s31, 0
      %p129 = por %p127, %p128
      %p130 = scmp.ne.s32.totalorder %s118, %s119
      %p131 = scmp.eq.s32.totalorder %s32, 1
      %p132 = por %p130, %p131
      %p134 = scmp.ne.s32.totalorder %s119, %s133
      %p135 = scmp.eq.s32.totalorder %s32, 0
      %p136 = por %p134, %p135
      %s138 = sadd.s32 %s137, 1
      %p141 = scmp.eq.s32.totalorder %s26, 1
      %p142 = scmp.ne.s32.totalorder %s137, %s139
      %p143 = scmp.eq.s32.totalorder %s26, 0
      %p144 = por %p142, %p143
      %p145 = scmp.ne.s32.totalorder %s137, %s139
      %p146 = scmp.eq.s32.totalorder %s31, 1
      %p147 = por %p145, %p146
      %p148 = scmp.ne.s32.totalorder %s139, %s140
      %p149 = scmp.eq.s32.totalorder %s31, 0
      %p150 = por %p148, %p149
      %p151 = scmp.ne.s32.totalorder %s139, %s140
      %p152 = scmp.eq.s32.totalorder %s32, 1
      %p153 = por %p151, %p152
      %p155 = scmp.ne.s32.totalorder %s140, %s154
      %p156 = scmp.eq.s32.totalorder %s32, 0
      %p157 = por %p155, %p156
      %s159 = sadd.s32 %s158, 1
      %p162 = scmp.eq.s32.totalorder %s26, 1
      %p163 = scmp.ne.s32.totalorder %s158, %s160
      %p164 = scmp.eq.s32.totalorder %s26, 0
      %p165 = por %p163, %p164
      %p166 = scmp.ne.s32.totalorder %s158, %s160
      %p167 = scmp.eq.s32.totalorder %s31, 1
      %p168 = por %p166, %p167
      %p169 = scmp.ne.s32.totalorder %s160, %s161
      %p170 = scmp.eq.s32.totalorder %s31, 0
      %p171 = por %p169, %p170
      %p172 = scmp.ne.s32.totalorder %s160, %s161
      %p173 = scmp.eq.s32.totalorder %s32, 1
      %p174 = por %p172, %p173
      %p176 = scmp.ne.s32.totalorder %s161, %s175
      %p177 = scmp.eq.s32.totalorder %s32, 0
      %p178 = por %p176, %p177
      %s180 = sadd.s32 %s179, 1
      %p183 = scmp.eq.s32.totalorder %s26, 1
      %p184 = scmp.ne.s32.totalorder %s179, %s181
      %p185 = scmp.eq.s32.totalorder %s26, 0
      %p186 = por %p184, %p185
      %p187 = scmp.ne.s32.totalorder %s179, %s181
      %p188 = scmp.eq.s32.totalorder %s31, 1
      %p189 = por %p187, %p188
      %p190 = scmp.ne.s32.totalorder %s181, %s182
      %p191 = scmp.eq.s32.totalorder %s31, 0
      %p192 = por %p190, %p191
      %p193 = scmp.ne.s32.totalorder %s181, %s182
      %p194 = scmp.eq.s32.totalorder %s32, 1
      %p195 = por %p193, %p194
      %p197 = scmp.ne.s32.totalorder %s182, %s196
      %p198 = scmp.eq.s32.totalorder %s32, 0
      %p199 = por %p197, %p198
      %s200 = ssub.s32 %s33, %s45
      %s201 = ssub.s32 %s34, %s41
      %s202 = sor.u32 %s200, %s201
      %p203 = scmp.eq.s32.totalorder %s202, 0
      %s205 = sadd.s32 %s204, 1
      %s206 = scalar_select %p203, %s204, %s205
      %p209 = pneg %p203
      %p210 = scmp.eq.s32.totalorder %s26, 1
      %p211 = por %p209, %p210
      %p212 = scmp.ne.s32.totalorder %s204, %s207
      %p213 = scmp.eq.s32.totalorder %s26, 0
      %p214 = por %p212, %p213
      %p215 = scmp.ne.s32.totalorder %s204, %s207
      %p216 = scmp.eq.s32.totalorder %s31, 1
      %p217 = por %p215, %p216
      %p218 = scmp.ne.s32.totalorder %s207, %s208
      %p219 = scmp.eq.s32.totalorder %s31, 0
      %p220 = por %p218, %p219
      %p221 = scmp.ne.s32.totalorder %s207, %s208
      %p222 = scmp.eq.s32.totalorder %s32, 1
      %p223 = por %p221, %p222
      %p225 = scmp.ne.s32.totalorder %s208, %s224
      %p226 = scmp.eq.s32.totalorder %s32, 0
      %p227 = por %p225, %p226
      %s228 = ssub.s32 %s33, %s45
      %s229 = ssub.s32 %s34, %s41
      %s230 = sor.u32 %s228, %s229
      %p231 = scmp.eq.s32.totalorder %s230, 0
      %s233 = sadd.s32 %s232, 1
      %s234 = scalar_select %p231, %s232, %s233
      %p237 = pneg %p231
      %p238 = scmp.eq.s32.totalorder %s26, 1
      %p239 = por %p237, %p238
      %p240 = scmp.ne.s32.totalorder %s232, %s235
      %p241 = scmp.eq.s32.totalorder %s26, 0
      %p242 = por %p240, %p241
      %p243 = scmp.ne.s32.totalorder %s232, %s235
      %p244 = scmp.eq.s32.totalorder %s31, 1
      %p245 = por %p243, %p244
      %p246 = scmp.ne.s32.totalorder %s235, %s236
      %p247 = scmp.eq.s32.totalorder %s31, 0
      %p248 = por %p246, %p247
      %p249 = scmp.ne.s32.totalorder %s235, %s236
      %p250 = scmp.eq.s32.totalorder %s32, 1
      %p251 = por %p249, %p250
      %p253 = scmp.ne.s32.totalorder %s236, %s252
      %p254 = scmp.eq.s32.totalorder %s32, 0
      %p255 = por %p253, %p254
      %s256 = ssub.s32 %s33, %s45
      %s257 = ssub.s32 %s34, %s41
      %s258 = sor.u32 %s256, %s257
      %p259 = scmp.eq.s32.totalorder %s258, 0
      %s261 = sadd.s32 %s260, 1
      %s262 = scalar_select %p259, %s260, %s261
      %p265 = pneg %p259
      %p266 = scmp.eq.s32.totalorder %s26, 1
      %p267 = por %p265, %p266
      %p268 = scmp.ne.s32.totalorder %s260, %s263
      %p269 = scmp.eq.s32.totalorder %s26, 0
      %p270 = por %p268, %p269
      %p271 = scmp.ne.s32.totalorder %s260, %s263
      %p272 = scmp.eq.s32.totalorder %s31, 1
      %p273 = por %p271, %p272
      %p274 = scmp.ne.s32.totalorder %s263, %s264
      %p275 = scmp.eq.s32.totalorder %s31, 0
      %p276 = por %p274, %p275
      %p277 = scmp.ne.s32.totalorder %s263, %s264
      %p278 = scmp.eq.s32.totalorder %s32, 1
      %p279 = por %p277, %p278
      %p281 = scmp.ne.s32.totalorder %s264, %s280
      %p282 = scmp.eq.s32.totalorder %s32, 0
      %p283 = por %p281, %p282
      %p284 = scmp.le.s32.totalorder 1, %s26
      %p285 = scmp.lt.s32.totalorder %s26, 3
      %p286 = pnand %p284, %p285
      %p287 = pneg %p286
      // Predicated region
      $region9: #{tpu_custom_call.1} parent=5 // pred_check
        _
      $region10: #{tpu_custom_call.1} parent=5 // pred_check_branch
        %289 = sbr.rel (%p286) target = $region12
      $region11: #{tpu_custom_call.1} parent=5 // pred_region
        %s290 = ssub.s32 %s26, 1
        // Predicated region
        $region13: #{tpu_custom_call.1} parent=11 // pred_check
          %p291 = pneg %p87
        $region14: #{tpu_custom_call.1} parent=11 // pred_check_branch
          %293 = sbr.rel (%p291) target = $region16
        $region15: #{tpu_custom_call.1} parent=11 // pred_region
          _
        $region16: #{tpu_custom_call.1} parent=11 // pred_fallthru
          _
        // Predicated region
        $region17: #{tpu_custom_call.1} parent=11 // pred_check
          %p294 = pneg %p108
        $region18: #{tpu_custom_call.1} parent=11 // pred_check_branch
          %296 = sbr.rel (%p294) target = $region20
        $region19: #{tpu_custom_call.1} parent=11 // pred_region
          _
        $region20: #{tpu_custom_call.1} parent=11 // pred_fallthru
          _
        // Predicated region
        $region21: #{tpu_custom_call.1} parent=11 // pred_check
          %p297 = pneg %p129
        $region22: #{tpu_custom_call.1} parent=11 // pred_check_branch
          %299 = sbr.rel (%p297) target = $region24
        $region23: #{tpu_custom_call.1} parent=11 // pred_region
          _
        $region24: #{tpu_custom_call.1} parent=11 // pred_fallthru
          _
        // Predicated region
        $region25: #{tpu_custom_call.1} parent=11 // pred_check
          %p300 = pneg %p150
        $region26: #{tpu_custom_call.1} parent=11 // pred_check_branch
          %302 = sbr.rel (%p300) target = $region28
        $region27: #{tpu_custom_call.1} parent=11 // pred_region
          _
        $region28: #{tpu_custom_call.1} parent=11 // pred_fallthru
          _
        // Predicated region
        $region29: #{tpu_custom_call.1} parent=11 // pred_check
          %p303 = pneg %p171
        $region30: #{tpu_custom_call.1} parent=11 // pred_check_branch
          %305 = sbr.rel (%p303) target = $region32
        $region31: #{tpu_custom_call.1} parent=11 // pred_region
          %307 = vsyncadd [#allocation6], 0
          %s308 = sshll.u32 %s5, 4
          %s309 = int_to_ptr.hbm [resolvable:$true] %s308
          %s310 = sshll.u32 [#allocation5], 4
          %s311 = int_to_ptr.vmem [resolvable:$true] %s310
          %316 = dma.hbm_to_vmem [thread:$0]  %s309, 256, %s311, [#allocation6], 64, 64, 4
        $region32: #{tpu_custom_call.1} parent=11 // pred_fallthru
          _
        // Predicated region
        $region33: #{tpu_custom_call.1} parent=11 // pred_check
          %p317 = pneg %p192
        $region34: #{tpu_custom_call.1} parent=11 // pred_check_branch
          %319 = sbr.rel (%p317) target = $region36
        $region35: #{tpu_custom_call.1} parent=11 // pred_region
          _
        $region36: #{tpu_custom_call.1} parent=11 // pred_fallthru
          _
      $region12: #{tpu_custom_call.1} parent=5 // pred_fallthru
        _
      %p320 = scmp.lt.s32.totalorder %s26, 2
      // Predicated region
      $region37: #{tpu_custom_call.1} parent=5 // pred_check
        %p321 = pneg %p320
      $region38: #{tpu_custom_call.1} parent=5 // pred_check_branch
        %323 = sbr.rel (%p321) target = $region40
      $region39: #{tpu_custom_call.1} parent=5 // pred_region
        // Predicated region
        $region41: #{tpu_custom_call.1} parent=39 // pred_check
          %p324 = pneg %p60
        $region42: #{tpu_custom_call.1} parent=39 // pred_check_branch
          %326 = sbr.rel (%p324) target = $region44
        $region43: #{tpu_custom_call.1} parent=39 // pred_region
          %s327 = sand.u32 %s50, 1
          %s328 = scalar_lea.sflag [#allocation3], %s327
          %s329 = sand.u32 %s50, 1
          %s330 = smul.addr %s329, 32
          %s331 = scalar_lea.vmem [#allocation2], %s330
          %333 = vsyncadd %s328, 0
          %s334 = smul.addr %s33, 4
          %s335 = sadd.s32 %s34, %s334
          %s336 = smul.addr %s335, 8
          %s337 = scalar_lea.hbm %s0, %s336
          %s338 = sshll.u32 %s337, 4
          %s339 = int_to_ptr.hbm [resolvable:$true] %s338
          %s340 = sshll.u32 %s331, 4
          %s341 = int_to_ptr.vmem [resolvable:$true] %s340
          %346 = dma.hbm_to_vmem [thread:$0]  %s339, 512, %s341, %s328, 128, 128, 8
        $region44: #{tpu_custom_call.1} parent=39 // pred_fallthru
          _
      $region40: #{tpu_custom_call.1} parent=5 // pred_fallthru
        _
      %p347 = scmp.le.s32.totalorder 1, %s26
      %p348 = scmp.lt.s32.totalorder %s26, 3
      %p349 = pnand %p347, %p348
      %p350 = pneg %p349
      // Predicated region
      $region45: #{tpu_custom_call.1} parent=5 // pred_check
        _
      $region46: #{tpu_custom_call.1} parent=5 // pred_check_branch
        %352 = sbr.rel (%p349) target = $region48
      $region47: #{tpu_custom_call.1} parent=5 // pred_region
        %s353 = ssub.s32 %s26, 1
        %s354 = sand.u32 %s53, 1
        %s355 = scalar_lea.sflag [#allocation3], %s354
        %s356 = sand.u32 %s53, 1
        %s357 = smul.addr %s356, 32
        %s358 = scalar_lea.vmem [#allocation2], %s357
        // Predicated region
        $region49: #{tpu_custom_call.1} parent=47 // pred_check
          %p359 = pneg %p66
        $region50: #{tpu_custom_call.1} parent=47 // pred_check_branch
          %361 = sbr.rel (%p359) target = $region52
        $region51: #{tpu_custom_call.1} parent=47 // pred_region
          %363 = dma.done %s355, 512
        $region52: #{tpu_custom_call.1} parent=47 // pred_fallthru
          _
        // Predicated region
        $region53: #{tpu_custom_call.1} parent=47 // pred_check
          %p364 = pneg %p171
        $region54: #{tpu_custom_call.1} parent=47 // pred_check_branch
          %366 = sbr.rel (%p364) target = $region56
        $region55: #{tpu_custom_call.1} parent=47 // pred_region
          %368 = dma.done [#allocation6], 256
        $region56: #{tpu_custom_call.1} parent=47 // pred_fallthru
          _
        %s369 = sand.u32 %s53, 1
        %s370 = scalar_lea.sflag [#allocation3], %s369
        %s371 = sand.u32 %s53, 1
        %s372 = smul.addr %s371, 32
        %s373 = scalar_lea.vmem [#allocation2], %s372
        %p374 = pneg %p66
        %p375 = pneg %p63
        %p376 = pneg %p87
        %p377 = pneg %p84
        %p378 = pneg %p108
        %p379 = pneg %p105
        %p380 = pneg %p129
        %p381 = pneg %p126
        %p382 = pneg %p150
        %p383 = pneg %p147
        %p384 = pneg %p171
        %p385 = pneg %p168
        %p386 = pneg %p192
        %p387 = pneg %p189
        %p388 = pneg %p220
        %p389 = pneg %p217
        %s390 = sand.u32 %s207, 1
        %s391 = scalar_lea.sflag [#allocation4], %s390
        %s392 = sand.u32 %s207, 1
        %s393 = smul.addr %s392, 2
        %s394 = scalar_lea.vmem [#allocation7], %s393
        %p395 = pneg %p248
        %p396 = pneg %p245
        %s397 = sand.u32 %s235, 1
        %s398 = scalar_lea.sflag [#allocation9], %s397
        %s399 = sand.u32 %s235, 1
        %s400 = smul.addr %s399, 2
        %s401 = scalar_lea.vmem [#allocation8], %s400
        %p402 = pneg %p276
        %p403 = pneg %p273
        %s404 = smul.u32 16, %s36
        %p405 = scmp.lt.s32.totalorder %s35, 1
        %s406 = scalar_select %p405, %s35, 1
        %p407 = scmp.lt.s32.totalorder %s404, 15
        %s408 = scalar_select %p407, %s404, 15
        %s409 = smul.addr %s406, 16
        %s410 = sadd.s32 %s408, %s409
        %s411 = smul.addr %s410, 4
        %s412 = scalar_lea.vmem %s9, %s411
        %s413 = smul.u32 16, %s36
        %p414 = scmp.lt.s32.totalorder %s35, 1
        %s415 = scalar_select %p414, %s35, 1
        %p416 = scmp.lt.s32.totalorder %s413, 15
        %s417 = scalar_select %p416, %s413, 15
        %s418 = smul.addr %s415, 16
        %s419 = sadd.s32 %s417, %s418
        %s420 = smul.addr %s419, 4
        %s421 = scalar_lea.vmem %s9, %s420
        %s422 = smul.u32 16, %s36
        %v424 = vld [vmem:[%s358] sm:$0xff]
        %v425 = vld [vmem:[%s358 + $0x8] sm:$0xff]
        %v426 = vld [vmem:[%s358 + $0x10] sm:$0xff]
        %v427 = vld [vmem:[%s358 + $0x18] sm:$0xff]
        %v428 = vpack.c.bf16 %v425, %v424
        %v429 = vpack.c.bf16 %v427, %v426
        %v430 = vld [vmem:[%s1] sm:$0x3]
        %v431 = vld [vmem:[%s2] sm:$0xf]
        %433 = vset.pattern.permute.xlu0 0
        %434 = vperm.xlu0 %433, %v431
        %v435 = vpop.permute.xlu0 %434
        %vm437 = vcmask 261120
        %v439 = vsel %vm437, %v430, 0
        %441 = vmatpush.bf16.msra.mxu0 0
        %442 = vmatpush.bf16.msra.mxu0 0
        %443 = vmatpush.bf16.msra.mxu0 0
        %444 = vmatpush.bf16.msra.mxu0 0
        %445 = vmatpush.bf16.msra.mxu0 0
        %446 = vmatpush.bf16.msra.mxu0 0
        %447 = vmatpush.bf16.msra.mxu0 %v429
        %448 = vmatpush.bf16.msra.mxu0 %v428
        %449 = vmatmul.bf16.gmra.mxu0 %v439
        %v450 = vpop.f32.mrf.mxu0
        %v451 = vadd.f32 %v435, %v450
        %v452 = vpop.f32.mrf.mxu0
        %453 = vdwg.mxu0
        %v454 = vpack.c.bf16 %v451, %v451
        %455 = vst [vmem:[%s394] sm:$0x3] %v454
        %v456 = vld [vmem:[%s3] sm:$0x3]
        %v457 = vld [vmem:[%s4] sm:$0xf]
        %459 = vset.pattern.permute.xlu0 0
        %460 = vperm.xlu0 %459, %v457
        %v461 = vpop.permute.xlu0 %460
        %v464 = vsel %vm437, %v456, 0
        %466 = vmatpush.bf16.msra.mxu0 0
        %467 = vmatpush.bf16.msra.mxu0 0
        %468 = vmatpush.bf16.msra.mxu0 0
        %469 = vmatpush.bf16.msra.mxu0 0
        %470 = vmatpush.bf16.msra.mxu0 0
        %471 = vmatpush.bf16.msra.mxu0 0
        %472 = vmatpush.bf16.msra.mxu0 %v429
        %473 = vmatpush.bf16.msra.mxu0 %v428
        %474 = vmatmul.bf16.gmra.mxu0 %v464
        %v475 = vpop.f32.mrf.mxu0
        %v476 = vadd.f32 %v461, %v475
        %v477 = vpop.f32.mrf.mxu0
        %478 = vdwg.mxu0
        %v479 = vpack.c.bf16 %v476, %v476
        %480 = vst [vmem:[%s401] sm:$0x3] %v479
        %v481 = vld [vmem:[#allocation5] sm:$0xf]
        %v482 = vld [vmem:[#allocation5 + $0x4] sm:$0xf]
        %v483 = vld [vmem:[#allocation5 + $0x8] sm:$0xf]
        %v484 = vld [vmem:[#allocation5 + $0xc] sm:$0xf]
        %v485 = vld [vmem:[%s6] sm:$0x1]
        %v487 = vperm.slane %v485, 0
        %489 = vxpose.xlu0.c.b16.start [1/8] %v428, 128
        %490 = vxpose.xlu0.c.b16.cont [2/8] %v429, 128
        %491 = vxpose.xlu0.c.b16.cont [3/8] 0, 128
        %492 = vxpose.xlu0.c.b16.cont [4/8] 0, 128
        %493 = vxpose.xlu0.c.b16.cont [5/8] 0, 128
        %494 = vxpose.xlu0.c.b16.cont [6/8] 0, 128
        %495 = vxpose.xlu0.c.b16.cont [7/8] 0, 128
        %496 = vxpose.xlu0.c.b16.end [8/8] 0, 128
        %v497 = vpop.trf.xlu0
        %v498 = vpop.trf.xlu0
        %v499 = vpop.trf.xlu0
        %v500 = vpop.trf.xlu0
        %v501 = vpop.trf.xlu0
        %v502 = vpop.trf.xlu0
        %v503 = vpop.trf.xlu0
        %v504 = vpop.trf.xlu0
        %v509 = vunpack.c.l.b16 %v481
        %v510 = vunpack.c.l.b16 %v482
        %v511 = vunpack.c.l.b16 %v483
        %v512 = vunpack.c.l.b16 %v484
        %v513 = vpack.c.b16 %v510, %v509
        %v514 = vpack.c.b16 %v512, %v511
        %v518 = vsel %vm437, %v497, 0
        %v521 = vsel %vm437, %v498, 0
        %v524 = vsel %vm437, %v499, 0
        %v527 = vsel %vm437, %v500, 0
        %v530 = vsel %vm437, %v501, 0
        %v533 = vsel %vm437, %v502, 0
        %v536 = vsel %vm437, %v503, 0
        %v539 = vsel %vm437, %v504, 0
        %541 = vmatpush.bf16.msra.mxu0 0
        %542 = vmatpush.bf16.msra.mxu0 0
        %543 = vmatpush.bf16.msra.mxu0 0
        %544 = vmatpush.bf16.msra.mxu0 0
        %545 = vmatpush.bf16.msra.mxu0 0
        %546 = vmatpush.bf16.msra.mxu0 0
        %547 = vmatpush.bf16.msra.mxu0 %v514
        %548 = vmatpush.bf16.msra.mxu0 %v513
        %549 = vmatmul.bf16.gmra.mxu0 %v518
        %v550 = vpop.f32.mrf.mxu0
        %v551 = vadd.f32 %v487, %v550
        %v552 = vpop.f32.mrf.mxu0
        %v553 = vadd.f32 %v487, %v552
        %554 = vmatmul.bf16.gmra.mxu0 %v521
        %v555 = vpop.f32.mrf.mxu0
        %v556 = vadd.f32 %v487, %v555
        %v557 = vpop.f32.mrf.mxu0
        %v558 = vadd.f32 %v487, %v557
        %559 = vmatmul.bf16.gmra.mxu0 %v524
        %v560 = vpop.f32.mrf.mxu0
        %v561 = vadd.f32 %v487, %v560
        %v562 = vpop.f32.mrf.mxu0
        %v563 = vadd.f32 %v487, %v562
        %564 = vmatmul.bf16.gmra.mxu0 %v527
        %v565 = vpop.f32.mrf.mxu0
        %v566 = vadd.f32 %v487, %v565
        %v567 = vpop.f32.mrf.mxu0
        %v568 = vadd.f32 %v487, %v567
        %569 = vmatmul.bf16.gmra.mxu0 %v530
        %v570 = vpop.f32.mrf.mxu0
        %v571 = vadd.f32 %v487, %v570
        %v572 = vpop.f32.mrf.mxu0
        %v573 = vadd.f32 %v487, %v572
        %574 = vmatmul.bf16.gmra.mxu0 %v533
        %v575 = vpop.f32.mrf.mxu0
        %v576 = vadd.f32 %v487, %v575
        %v577 = vpop.f32.mrf.mxu0
        %v578 = vadd.f32 %v487, %v577
        %579 = vmatmul.bf16.gmra.mxu0 %v536
        %v580 = vpop.f32.mrf.mxu0
        %v581 = vadd.f32 %v487, %v580
        %v582 = vpop.f32.mrf.mxu0
        %v583 = vadd.f32 %v487, %v582
        %584 = vmatmul.bf16.gmra.mxu0 %v539
        %v585 = vpop.f32.mrf.mxu0
        %v586 = vadd.f32 %v487, %v585
        %v587 = vpop.f32.mrf.mxu0
        %v588 = vadd.f32 %v487, %v587
        %589 = vdwg.mxu0
        %v590 = vpack.c.bf16 %v551, %v551
        %v591 = vpack.c.bf16 %v553, %v553
        %v592 = vpack.c.bf16 %v556, %v556
        %v593 = vpack.c.bf16 %v558, %v558
        %v594 = vpack.c.bf16 %v561, %v561
        %v595 = vpack.c.bf16 %v563, %v563
        %v596 = vpack.c.bf16 %v566, %v566
        %v597 = vpack.c.bf16 %v568, %v568
        %v598 = vpack.c.bf16 %v571, %v571
        %v599 = vpack.c.bf16 %v573, %v573
        %v600 = vpack.c.bf16 %v576, %v576
        %v601 = vpack.c.bf16 %v578, %v578
        %v602 = vpack.c.bf16 %v581, %v581
        %v603 = vpack.c.bf16 %v583, %v583
        %v604 = vpack.c.bf16 %v586, %v586
        %v605 = vpack.c.bf16 %v588, %v588
        %vm606 = vcmask 257024
        %607 = vst.msk [vmem:[%s421] sm:$0xf] %vm606, %v590
        %608 = vst.msk [vmem:[%s421 + $0x4] sm:$0xf] %vm606, %v591
        %609 = vst.msk [vmem:[%s421 + $0x8] sm:$0xf] %vm606, %v592
        %610 = vst.msk [vmem:[%s421 + $0xc] sm:$0xf] %vm606, %v593
        %611 = vst.msk [vmem:[%s421 + $0x10] sm:$0xf] %vm606, %v594
        %612 = vst.msk [vmem:[%s421 + $0x14] sm:$0xf] %vm606, %v595
        %613 = vst.msk [vmem:[%s421 + $0x18] sm:$0xf] %vm606, %v596
        %614 = vst.msk [vmem:[%s421 + $0x1c] sm:$0xf] %vm606, %v597
        %615 = vst.msk [vmem:[%s421 + $0x20] sm:$0xf] %vm606, %v598
        %616 = vst.msk [vmem:[%s421 + $0x24] sm:$0xf] %vm606, %v599
        %617 = vst.msk [vmem:[%s421 + $0x28] sm:$0xf] %vm606, %v600
        %618 = vst.msk [vmem:[%s421 + $0x2c] sm:$0xf] %vm606, %v601
        %619 = vst.msk [vmem:[%s421 + $0x30] sm:$0xf] %vm606, %v602
        %620 = vst.msk [vmem:[%s421 + $0x34] sm:$0xf] %vm606, %v603
        %621 = vst.msk [vmem:[%s421 + $0x38] sm:$0xf] %vm606, %v604
        %622 = vst.msk [vmem:[%s421 + $0x3c] sm:$0xf] %vm606, %v605
        %s623 = sand.u32 %s207, 1
        %s624 = scalar_lea.sflag [#allocation4], %s623
        %s625 = sand.u32 %s207, 1
        %s626 = smul.addr %s625, 2
        %s627 = scalar_lea.vmem [#allocation7], %s626
        %s628 = sand.u32 %s235, 1
        %s629 = scalar_lea.sflag [#allocation9], %s628
        %s630 = sand.u32 %s235, 1
        %s631 = smul.addr %s630, 2
        %s632 = scalar_lea.vmem [#allocation8], %s631
        %s633 = smul.u32 16, %s36
        %p634 = scmp.lt.s32.totalorder %s35, 1
        %s635 = scalar_select %p634, %s35, 1
        %p636 = scmp.lt.s32.totalorder %s633, 15
        %s637 = scalar_select %p636, %s633, 15
        %s638 = smul.addr %s635, 16
        %s639 = sadd.s32 %s637, %s638
        %s640 = smul.addr %s639, 4
        %s641 = scalar_lea.vmem %s9, %s640
        // Predicated region
        $region57: #{tpu_custom_call.1} parent=47 // pred_check
          %p642 = pneg %p217
        $region58: #{tpu_custom_call.1} parent=47 // pred_check_branch
          %644 = sbr.rel (%p642) target = $region60
        $region59: #{tpu_custom_call.1} parent=47 // pred_region
          %646 = vsyncadd %s624, 0
          %s647 = sadd.s32 %s36, %s35
          %s648 = smul.addr %s647, 2
          %s649 = scalar_lea.hbm %s7, %s648
          %s651 = sshll.u32 %s627, 4
          %s652 = int_to_ptr.vmem [resolvable:$true] %s651
          %s653 = sshll.u32 %s649, 4
          %s654 = int_to_ptr.hbm [resolvable:$true] %s653
          %656 = dma.vmem_to_hbm [thread:$0]  %s652, 32, %s654, %s624
        $region60: #{tpu_custom_call.1} parent=47 // pred_fallthru
          _
        // Predicated region
        $region61: #{tpu_custom_call.1} parent=47 // pred_check
          %p657 = pneg %p245
        $region62: #{tpu_custom_call.1} parent=47 // pred_check_branch
          %659 = sbr.rel (%p657) target = $region64
        $region63: #{tpu_custom_call.1} parent=47 // pred_region
          %661 = vsyncadd %s629, 0
          %s662 = sadd.s32 %s36, %s35
          %s663 = smul.addr %s662, 2
          %s664 = scalar_lea.hbm %s8, %s663
          %s666 = sshll.u32 %s632, 4
          %s667 = int_to_ptr.vmem [resolvable:$true] %s666
          %s668 = sshll.u32 %s664, 4
          %s669 = int_to_ptr.hbm [resolvable:$true] %s668
          %671 = dma.vmem_to_hbm [thread:$0]  %s667, 32, %s669, %s629
        $region64: #{tpu_custom_call.1} parent=47 // pred_fallthru
          _
        // Predicated region
        $region65: #{tpu_custom_call.1} parent=47 // pred_check
          %p672 = pneg %p273
        $region66: #{tpu_custom_call.1} parent=47 // pred_check_branch
          %674 = sbr.rel (%p672) target = $region68
        $region67: #{tpu_custom_call.1} parent=47 // pred_region
          %s675 = smul.u32 16, %s36
        $region68: #{tpu_custom_call.1} parent=47 // pred_fallthru
          _
      $region48: #{tpu_custom_call.1} parent=5 // pred_fallthru
        _
      %p676 = scmp.le.s32.totalorder 2, %s26
      // Predicated region
      $region69: #{tpu_custom_call.1} parent=5 // pred_check
        %p677 = pneg %p676
      $region70: #{tpu_custom_call.1} parent=5 // pred_check_branch
        %679 = sbr.rel (%p677) target = $region72
      $region71: #{tpu_custom_call.1} parent=5 // pred_region
        %s680 = ssub.s32 %s26, 2
        // Predicated region
        $region73: #{tpu_custom_call.1} parent=71 // pred_check
          %p681 = pneg %p223
        $region74: #{tpu_custom_call.1} parent=71 // pred_check_branch
          %683 = sbr.rel (%p681) target = $region76
        $region75: #{tpu_custom_call.1} parent=71 // pred_region
          %s684 = sand.u32 %s208, 1
          %s685 = scalar_lea.sflag [#allocation4], %s684
          %s686 = sand.u32 %s208, 1
          %s687 = smul.addr %s686, 2
          %s688 = scalar_lea.vmem [#allocation7], %s687
          %690 = dma.done %s685, 32
        $region76: #{tpu_custom_call.1} parent=71 // pred_fallthru
          _
        // Predicated region
        $region77: #{tpu_custom_call.1} parent=71 // pred_check
          %p691 = pneg %p251
        $region78: #{tpu_custom_call.1} parent=71 // pred_check_branch
          %693 = sbr.rel (%p691) target = $region80
        $region79: #{tpu_custom_call.1} parent=71 // pred_region
          %s694 = sand.u32 %s236, 1
          %s695 = scalar_lea.sflag [#allocation9], %s694
          %s696 = sand.u32 %s236, 1
          %s697 = smul.addr %s696, 2
          %s698 = scalar_lea.vmem [#allocation8], %s697
          %700 = dma.done %s695, 32
        $region80: #{tpu_custom_call.1} parent=71 // pred_fallthru
          _
        // Predicated region
        $region81: #{tpu_custom_call.1} parent=71 // pred_check
          %p701 = pneg %p279
        $region82: #{tpu_custom_call.1} parent=71 // pred_check_branch
          %703 = sbr.rel (%p701) target = $region84
        $region83: #{tpu_custom_call.1} parent=71 // pred_region
          %s704 = smul.u32 16, %s38
          %p705 = scmp.lt.s32.totalorder %s37, 1
          %s706 = scalar_select %p705, %s37, 1
          %p707 = scmp.lt.s32.totalorder %s704, 15
          %s708 = scalar_select %p707, %s704, 15
          %s709 = smul.addr %s706, 16
          %s710 = sadd.s32 %s708, %s709
          %s711 = smul.addr %s710, 4
          %s712 = scalar_lea.vmem %s9, %s711
        $region84: #{tpu_custom_call.1} parent=71 // pred_fallthru
          _
      $region72: #{tpu_custom_call.1} parent=5 // pred_fallthru
        _
    $region6: #{tpu_custom_call.1} parent=1 // loop_footer
      %s30 = sadd.s32 1, %s26
    $region7: #{tpu_custom_call.1} parent=1 // loop_footer_branch
      %25 = sbr.rel target = $region3
    $region8: #{tpu_custom_call.1} parent=1 // loop_exit
      _
    %713 = vsyncpa [#allocation3], 1
    %s714 = scalar_lea.sflag [#allocation3], 1
    %715 = vsyncpa %s714, 1
    %716 = vsyncpa [#allocation6], 1
    %717 = vsyncpa [#allocation4], 1
    %s718 = scalar_lea.sflag [#allocation4], 1
    %719 = vsyncpa %s718, 1
    %720 = vsyncpa [#allocation9], 1
    %s721 = scalar_lea.sflag [#allocation9], 1
    %722 = vsyncpa %s721, 1

</llo_original>
